<compile_context>
chip_gen: v5e
topology: v5e:2x2
jax: 0.10.0
libtpu: 0.0.40
codegen_flags: <defaults>
</compile_context>

<pallas_src>
import jax
import jax.numpy as jnp
from jax.experimental import pallas as pl
from jax.experimental.pallas import tpu as pltpu

_SUBLANE = 8      # f32 sublane granularity for the batch (second-to-last) axis
_MAX_TB = 1024    # max batch rows per grid step (sweep 512-2048 at large B)


def _artistnet_kernel(x_ref, w1_ref, b1_ref, w2_ref, b2_ref, wo_ref, bo_ref,
                      out_ref):
    x = x_ref[...]                                           # [TB, D]

    # Hidden layer 1: Linear + sigmoid.
    h1 = jnp.dot(x, w1_ref[...], preferred_element_type=jnp.float32)
    h1 = jax.nn.sigmoid(h1 + b1_ref[...])                    # bias [1, D] bcast

    # Hidden layer 2: Linear + ReLU.
    h2 = jnp.dot(h1, w2_ref[...], preferred_element_type=jnp.float32)
    h2 = jnp.maximum(h2 + b2_ref[...], 0.0)

    # Output layer: Linear -> logits [TB, C] at natural class width.
    z = jnp.dot(h2, wo_ref[...], preferred_element_type=jnp.float32)
    z = z + bo_ref[...]

    # Numerically stable log_softmax over the class (last) axis.
    z_max = jnp.max(z, axis=-1, keepdims=True)
    shifted = z - z_max
    lse = jnp.log(jnp.sum(jnp.exp(shifted), axis=-1, keepdims=True))
    out_ref[...] = (shifted - lse).astype(out_ref.dtype)


def _round_up(n, m):
    return -(-n // m) * m


@jax.jit
def artistnet_forward(x, w1, b1, w2, b2, wo, bo):
    """x: [B, D]; w*: [in, out]; b*: [1, out]. Returns log-probs [B, C] (f32)."""
    B, D = x.shape
    C = wo.shape[1]

    # Adaptive batch tile: multiple of 8 sublanes, capped at _MAX_TB.
    TB = min(_round_up(B, _SUBLANE), _MAX_TB)
    Bp = _round_up(B, TB)

    x = x.astype(jnp.float32)
    if Bp != B:
        x = jnp.pad(x, ((0, Bp - B), (0, 0)))     # row pad only (≤ TB-1 rows)

    # Constant-index spec -> tensor stays VMEM-resident across grid steps.
    resident = lambda shape: pl.BlockSpec(shape, lambda i: (0, 0))

    out = pl.pallas_call(
        _artistnet_kernel,
        out_shape=jax.ShapeDtypeStruct((Bp, C), jnp.float32),
        grid=(Bp // TB,),
        in_specs=[
            pl.BlockSpec((TB, D), lambda i: (i, 0)),   # x: streamed over batch
            resident((D, D)),                          # w1
            resident((1, D)),                          # b1
            resident((D, D)),                          # w2
            resident((1, D)),                          # b2
            resident((D, C)),                          # wo
            resident((1, C)),                          # bo
        ],
        out_specs=pl.BlockSpec((TB, C), lambda i: (i, 0)),
        compiler_params=pltpu.CompilerParams(
            dimension_semantics=("parallel",)),        # v7x: shard across TCs
    )(x, w1, b1, w2, b2, wo, bo)

    return out if Bp == B else out[:B]


def init_params(key, d_emb, n_classes):
    """Deterministic init mimicking nn.Linear's uniform(-1/sqrt(in), 1/sqrt(in))."""
    ks = jax.random.split(key, 6)
    bound = 1.0 / jnp.sqrt(jnp.float32(d_emb))
    u = lambda k, shape: jax.random.uniform(
        k, shape, dtype=jnp.float32, minval=-bound, maxval=bound)
    # Stored as [in, out] (transposed relative to PyTorch's [out, in]).
    w1 = u(ks[0], (d_emb, d_emb))
    b1 = u(ks[1], (1, d_emb))
    w2 = u(ks[2], (d_emb, d_emb))
    b2 = u(ks[3], (1, d_emb))
    wo = u(ks[4], (d_emb, n_classes))
    bo = u(ks[5], (1, n_classes))
    return w1, b1, w2, b2, wo, bo


def reference_forward(x, w1, b1, w2, b2, wo, bo):
    h1 = jax.nn.sigmoid(x @ w1 + b1)
    h2 = jnp.maximum(h1 @ w2 + b2, 0.0)
    z = h2 @ wo + bo
    return jax.nn.log_softmax(z, axis=-1)


if __name__ == "__main__":
    d_emb = 32          # embedding dimension (hidden width)
    n_classes = 4       # len(artist_classes)
    batch = 8

    key = jax.random.PRNGKey(0)
    k_x, k_p = jax.random.split(key)
    x = jax.random.normal(k_x, (batch, d_emb), dtype=jnp.float32)
    params = init_params(k_p, d_emb, n_classes)

    out = artistnet_forward(x, *params)
    out = jax.block_until_ready(out)

    ref = reference_forward(x, *params)
    assert out.shape == (batch, n_classes)
    assert jnp.allclose(out, ref, atol=1e-5, rtol=1e-5)
    # log-probs should exponentiate-and-sum to 1 per row
    assert jnp.allclose(jnp.sum(jnp.exp(out), axis=-1), 1.0, atol=1e-5)

    print("KERNEL_OK")
</pallas_src>

<mosaic_0001>
module attributes {stable_mosaic.version = 11 : i64} {
  func.func @_artistnet_kernel(%arg0: i32, %arg1: memref<8x32xf32, #tpu.memory_space<vmem>>, %arg2: memref<32x32xf32, #tpu.memory_space<vmem>>, %arg3: memref<1x32xf32, #tpu.memory_space<vmem>>, %arg4: memref<32x32xf32, #tpu.memory_space<vmem>>, %arg5: memref<1x32xf32, #tpu.memory_space<vmem>>, %arg6: memref<32x4xf32, #tpu.memory_space<vmem>>, %arg7: memref<1x4xf32, #tpu.memory_space<vmem>>, %arg8: memref<8x4xf32, #tpu.memory_space<vmem>>) attributes {dimension_semantics = [#tpu.dimension_semantics<parallel>], iteration_bounds = array<i64: 1>, scalar_prefetch = 0 : i64, scratch_operands = 0 : i64, tpu.core_type = #tpu.core_type<tc>, window_params = [{transform_indices = @transform_0, window_bounds = array<i64: 8, 32>}, {pipeline_mode = #tpu.pipeline_mode<synchronous>, transform_indices = @transform_1, window_bounds = array<i64: 32, 32>}, {pipeline_mode = #tpu.pipeline_mode<synchronous>, transform_indices = @transform_2, window_bounds = array<i64: 1, 32>}, {pipeline_mode = #tpu.pipeline_mode<synchronous>, transform_indices = @transform_3, window_bounds = array<i64: 32, 32>}, {pipeline_mode = #tpu.pipeline_mode<synchronous>, transform_indices = @transform_4, window_bounds = array<i64: 1, 32>}, {pipeline_mode = #tpu.pipeline_mode<synchronous>, transform_indices = @transform_5, window_bounds = array<i64: 32, 4>}, {pipeline_mode = #tpu.pipeline_mode<synchronous>, transform_indices = @transform_6, window_bounds = array<i64: 1, 4>}, {transform_indices = @transform_7, window_bounds = array<i64: 8, 4>}]} {
    %c0 = arith.constant 0 : index
    %c0_0 = arith.constant 0 : index
    %0 = vector.load %arg1[%c0, %c0_0] : memref<8x32xf32, #tpu.memory_space<vmem>>, vector<8x32xf32>
    %c0_1 = arith.constant 0 : index
    %c0_2 = arith.constant 0 : index
    %1 = vector.load %arg2[%c0_1, %c0_2] : memref<32x32xf32, #tpu.memory_space<vmem>>, vector<32x32xf32>
    %cst = arith.constant dense<0.000000e+00> : vector<8x32xf32>
    %2 = tpu.matmul %0, %1, %cst {dimension_numbers = #tpu.dot_dimension_numbers<[1], [0], [0], [1], [0, 0, 1, 1], [], []>} : vector<8x32xf32>, vector<32x32xf32>, vector<8x32xf32> -> vector<8x32xf32>
    %c0_3 = arith.constant 0 : index
    %c0_4 = arith.constant 0 : index
    %3 = vector.load %arg3[%c0_3, %c0_4] : memref<1x32xf32, #tpu.memory_space<vmem>>, vector<1x32xf32>
    %4 = vector.broadcast %3 : vector<1x32xf32> to vector<8x32xf32>
    %5 = arith.addf %2, %4 : vector<8x32xf32>
    %6 = arith.negf %5 : vector<8x32xf32>
    %7 = math.exp %6 : vector<8x32xf32>
    %cst_5 = arith.constant 1.000000e+00 : f32
    %8 = vector.broadcast %cst_5 : f32 to vector<8x32xf32>
    %9 = arith.addf %8, %7 : vector<8x32xf32>
    %10 = arith.divf %8, %9 : vector<8x32xf32>
    %c0_6 = arith.constant 0 : index
    %c0_7 = arith.constant 0 : index
    %11 = vector.load %arg4[%c0_6, %c0_7] : memref<32x32xf32, #tpu.memory_space<vmem>>, vector<32x32xf32>
    %cst_8 = arith.constant dense<0.000000e+00> : vector<8x32xf32>
    %12 = tpu.matmul %10, %11, %cst_8 {dimension_numbers = #tpu.dot_dimension_numbers<[1], [0], [0], [1], [0, 0, 1, 1], [], []>} : vector<8x32xf32>, vector<32x32xf32>, vector<8x32xf32> -> vector<8x32xf32>
    %c0_9 = arith.constant 0 : index
    %c0_10 = arith.constant 0 : index
    %13 = vector.load %arg5[%c0_9, %c0_10] : memref<1x32xf32, #tpu.memory_space<vmem>>, vector<1x32xf32>
    %14 = vector.broadcast %13 : vector<1x32xf32> to vector<8x32xf32>
    %15 = arith.addf %12, %14 : vector<8x32xf32>
    %cst_11 = arith.constant 0.000000e+00 : f32
    %16 = vector.broadcast %cst_11 : f32 to vector<8x32xf32>
    %17 = arith.maximumf %15, %16 : vector<8x32xf32>
    %c0_12 = arith.constant 0 : index
    %c0_13 = arith.constant 0 : index
    %18 = vector.load %arg6[%c0_12, %c0_13] : memref<32x4xf32, #tpu.memory_space<vmem>>, vector<32x4xf32>
    %cst_14 = arith.constant dense<0.000000e+00> : vector<8x4xf32>
    %19 = tpu.matmul %17, %18, %cst_14 {dimension_numbers = #tpu.dot_dimension_numbers<[1], [0], [0], [1], [0, 0, 1, 1], [], []>} : vector<8x32xf32>, vector<32x4xf32>, vector<8x4xf32> -> vector<8x4xf32>
    %c0_15 = arith.constant 0 : index
    %c0_16 = arith.constant 0 : index
    %20 = vector.load %arg7[%c0_15, %c0_16] : memref<1x4xf32, #tpu.memory_space<vmem>>, vector<1x4xf32>
    %21 = vector.broadcast %20 : vector<1x4xf32> to vector<8x4xf32>
    %22 = arith.addf %19, %21 : vector<8x4xf32>
    %cst_17 = arith.constant dense<0xFF800000> : vector<8xf32>
    %23 = vector.multi_reduction <maximumf>, %22, %cst_17 [1] : vector<8x4xf32> to vector<8xf32>
    %24 = vector.shape_cast %23 : vector<8xf32> to vector<8x1xf32>
    %25 = vector.broadcast %24 : vector<8x1xf32> to vector<8x4xf32>
    %26 = arith.subf %22, %25 : vector<8x4xf32>
    %27 = math.exp %26 : vector<8x4xf32>
    %cst_18 = arith.constant dense<0.000000e+00> : vector<8xf32>
    %28 = vector.multi_reduction <add>, %27, %cst_18 [1] : vector<8x4xf32> to vector<8xf32>
    %29 = vector.shape_cast %28 : vector<8xf32> to vector<8x1xf32>
    %30 = math.log %29 : vector<8x1xf32>
    %31 = vector.broadcast %30 : vector<8x1xf32> to vector<8x4xf32>
    %32 = arith.subf %26, %31 : vector<8x4xf32>
    %c0_19 = arith.constant 0 : index
    %c0_20 = arith.constant 0 : index
    %33 = vector.load %arg8[%c0_19, %c0_20] : memref<8x4xf32, #tpu.memory_space<vmem>>, vector<8x4xf32>
    tpu.vector_store %arg8[%c0_19, %c0_20], %32 {strides = array<i32>} : memref<8x4xf32, #tpu.memory_space<vmem>>, vector<8x4xf32>,
    return
  }
  func.func @transform_0(%arg0: i32) -> (i32, i32) {
    %c0_i32 = arith.constant 0 : i32
    %c0_i32_0 = arith.constant 0 : i32
    return %arg0, %c0_i32 : i32, i32
  }
  func.func @transform_1(%arg0: i32) -> (i32, i32) {
    %c0_i32 = arith.constant 0 : i32
    %c0_i32_0 = arith.constant 0 : i32
    %c0_i32_1 = arith.constant 0 : i32
    return %c0_i32, %c0_i32_0 : i32, i32
  }
  func.func @transform_2(%arg0: i32) -> (i32, i32) {
    %c0_i32 = arith.constant 0 : i32
    %c0_i32_0 = arith.constant 0 : i32
    %c0_i32_1 = arith.constant 0 : i32
    return %c0_i32, %c0_i32_0 : i32, i32
  }
  func.func @transform_3(%arg0: i32) -> (i32, i32) {
    %c0_i32 = arith.constant 0 : i32
    %c0_i32_0 = arith.constant 0 : i32
    %c0_i32_1 = arith.constant 0 : i32
    return %c0_i32, %c0_i32_0 : i32, i32
  }
  func.func @transform_4(%arg0: i32) -> (i32, i32) {
    %c0_i32 = arith.constant 0 : i32
    %c0_i32_0 = arith.constant 0 : i32
    %c0_i32_1 = arith.constant 0 : i32
    return %c0_i32, %c0_i32_0 : i32, i32
  }
  func.func @transform_5(%arg0: i32) -> (i32, i32) {
    %c0_i32 = arith.constant 0 : i32
    %c0_i32_0 = arith.constant 0 : i32
    %c0_i32_1 = arith.constant 0 : i32
    return %c0_i32, %c0_i32_0 : i32, i32
  }
  func.func @transform_6(%arg0: i32) -> (i32, i32) {
    %c0_i32 = arith.constant 0 : i32
    %c0_i32_0 = arith.constant 0 : i32
    %c0_i32_1 = arith.constant 0 : i32
    return %c0_i32, %c0_i32_0 : i32, i32
  }
  func.func @transform_7(%arg0: i32) -> (i32, i32) {
    %c0_i32 = arith.constant 0 : i32
    %c0_i32_0 = arith.constant 0 : i32
    return %arg0, %c0_i32 : i32, i32
  }
}

</mosaic_0001>

<llo_original>
// kernel: artistnet_forward.1
$region0: #{artistnet_forward.1}
  #allocation0 [shape = 'u32[]', space=smem, size = 0x4, offset = 0x4, fixed_abs, tag = 'smem constant byte address 0x4 - core index']
  #allocation1 [shape = 'u32[72,128]{1,0:T(1,128)}', space=vmem, size = 0x9000, scoped, tag = 'internal scratch']
  %s0 = inlined_call_operand.hbm [shape: f32[8,32], index: 0, kind: input, shape index: {}]
  %s1 = inlined_call_operand.vmem [shape: f32[32,32], index: 1, kind: input, shape index: {}]
  %s2 = inlined_call_operand.vmem [shape: f32[1,32], index: 2, kind: input, shape index: {}]
  %s3 = inlined_call_operand.hbm [shape: f32[32,32], index: 3, kind: input, shape index: {}]
  %s4 = inlined_call_operand.vmem [shape: f32[1,32], index: 4, kind: input, shape index: {}]
  %s5 = inlined_call_operand.vmem [shape: f32[32,4], index: 5, kind: input, shape index: {}]
  %s6 = inlined_call_operand.vmem [shape: f32[1,4], index: 6, kind: input, shape index: {}]
  %s7 = inlined_call_operand.vmem [shape: f32[8,4], index: 7, kind: output, shape index: {}]
  %s8 = sld [smem:[#allocation0]]
  $region46: #{artistnet_forward.1} parent=0
    _
  %s10 = ssub.s32 1, %s8
  %s11 = scalar_select 0, %s10, %s8
  $region1: #{artistnet_forward.1} parent=0
    #allocation2 [shape = 'u8[4096]{0}', space=vmem, size = 0x1000, scoped, tag = 'input window, operand 0, single buffered']
    #allocation3 [shape = 's32[1]{0}', space=sflag, size = 0x4, scoped, tag = 'scoped memory for artistnet_forward.1']
    #allocation4 [shape = 'u8[16384]{0}', space=vmem, size = 0x4000, scoped, tag = 'input window, operand 3, single buffered']
    #allocation5 [shape = 's32[1]{0}', space=sflag, size = 0x4, scoped, tag = 'scoped memory for artistnet_forward.1']
    %12 = vsyncpa [#allocation3], 0
    %13 = vsyncpa [#allocation5], 0
    // Predicated region
    $region2: #{artistnet_forward.1} parent=1 // pred_check
      _
    $region3: #{artistnet_forward.1} parent=1 // pred_check_branch
      %15 = sbr.rel (0) target = $region5
    $region4: #{artistnet_forward.1} parent=1 // pred_region
      %17 = vsyncadd [#allocation3], 0
      %s19 = sshll.u32 %s0, 4
      %s20 = int_to_ptr.hbm [resolvable:$true] %s19
      %s21 = sshll.u32 [#allocation2], 4
      %s22 = int_to_ptr.vmem [resolvable:$true] %s21
      %24 = dma.hbm_to_vmem [thread:$0]  %s20, 128, %s22, [#allocation3]
    $region5: #{artistnet_forward.1} parent=1 // pred_fallthru
      _
    // Predicated region
    $region6: #{artistnet_forward.1} parent=1 // pred_check
      _
    $region7: #{artistnet_forward.1} parent=1 // pred_check_branch
      %26 = sbr.rel (0) target = $region9
    $region8: #{artistnet_forward.1} parent=1 // pred_region
      _
    $region9: #{artistnet_forward.1} parent=1 // pred_fallthru
      _
    // Predicated region
    $region10: #{artistnet_forward.1} parent=1 // pred_check
      _
    $region11: #{artistnet_forward.1} parent=1 // pred_check_branch
      %28 = sbr.rel (0) target = $region13
    $region12: #{artistnet_forward.1} parent=1 // pred_region
      _
    $region13: #{artistnet_forward.1} parent=1 // pred_fallthru
      _
    // Predicated region
    $region14: #{artistnet_forward.1} parent=1 // pred_check
      _
    $region15: #{artistnet_forward.1} parent=1 // pred_check_branch
      %30 = sbr.rel (0) target = $region17
    $region16: #{artistnet_forward.1} parent=1 // pred_region
      %32 = vsyncadd [#allocation5], 0
      %s33 = sshll.u32 %s3, 4
      %s34 = int_to_ptr.hbm [resolvable:$true] %s33
      %s35 = sshll.u32 [#allocation4], 4
      %s36 = int_to_ptr.vmem [resolvable:$true] %s35
      %41 = dma.hbm_to_vmem [thread:$0]  %s34, 512, %s36, [#allocation5], 128, 128, 8
    $region17: #{artistnet_forward.1} parent=1 // pred_fallthru
      _
    // Predicated region
    $region18: #{artistnet_forward.1} parent=1 // pred_check
      _
    $region19: #{artistnet_forward.1} parent=1 // pred_check_branch
      %43 = sbr.rel (0) target = $region21
    $region20: #{artistnet_forward.1} parent=1 // pred_region
      _
    $region21: #{artistnet_forward.1} parent=1 // pred_fallthru
      _
    // Predicated region
    $region22: #{artistnet_forward.1} parent=1 // pred_check
      _
    $region23: #{artistnet_forward.1} parent=1 // pred_check_branch
      %45 = sbr.rel (0) target = $region25
    $region24: #{artistnet_forward.1} parent=1 // pred_region
      _
    $region25: #{artistnet_forward.1} parent=1 // pred_fallthru
      _
    // Predicated region
    $region26: #{artistnet_forward.1} parent=1 // pred_check
      _
    $region27: #{artistnet_forward.1} parent=1 // pred_check_branch
      %47 = sbr.rel (0) target = $region29
    $region28: #{artistnet_forward.1} parent=1 // pred_region
      _
    $region29: #{artistnet_forward.1} parent=1 // pred_fallthru
      _
    // Predicated region
    $region30: #{artistnet_forward.1} parent=1 // pred_check
      _
    $region31: #{artistnet_forward.1} parent=1 // pred_check_branch
      %49 = sbr.rel (0) target = $region33
    $region32: #{artistnet_forward.1} parent=1 // pred_region
      %51 = dma.done [#allocation3], 128
    $region33: #{artistnet_forward.1} parent=1 // pred_fallthru
      _
    // Predicated region
    $region34: #{artistnet_forward.1} parent=1 // pred_check
      _
    $region35: #{artistnet_forward.1} parent=1 // pred_check_branch
      %53 = sbr.rel (0) target = $region37
    $region36: #{artistnet_forward.1} parent=1 // pred_region
      %55 = dma.done [#allocation5], 512
    $region37: #{artistnet_forward.1} parent=1 // pred_fallthru
      _
    %v56 = vld [vmem:[#allocation2] sm:$0xff]
    %v57 = vld [vmem:[%s1] sm:$0xff]
    %v58 = vld [vmem:[%s1 + $0x8] sm:$0xff]
    %v59 = vld [vmem:[%s1 + $0x10] sm:$0xff]
    %v60 = vld [vmem:[%s1 + $0x18] sm:$0xff]
    %v61 = vld [vmem:[%s2] sm:$0x1]
    %v63 = vperm.slane %v61, 0
    %vm65 = vcmask 261120
    %v67 = vsel %vm65, %v56, 0
    %69 = vmatpush.msra.mxu0 0.0
    %70 = vmatpush.msra.mxu0 0.0
    %71 = vmatpush.msra.mxu0 0.0
    %72 = vmatpush.msra.mxu0 0.0
    %73 = vmatpush.msra.mxu0 0.0
    %74 = vmatpush.msra.mxu0 0.0
    %75 = vmatpush.msra.mxu0 0.0
    %76 = vmatpush.msra.mxu0 0.0
    %77 = vmatpush.msra.mxu0 0.0
    %78 = vmatpush.msra.mxu0 0.0
    %79 = vmatpush.msra.mxu0 0.0
    %80 = vmatpush.msra.mxu0 0.0
    %81 = vmatpush.msra.mxu0 %v60
    %82 = vmatpush.msra.mxu0 %v59
    %83 = vmatpush.msra.mxu0 %v58
    %84 = vmatpush.msra.mxu0 %v57
    %85 = vmatmul.f32.gmra.mxu0 %v67
    %v86 = vpop.f32.mrf.mxu0
    %v87 = vadd.f32 %v63, %v86
    %88 = vdwg.mxu0
    %v89 = vxor.u32 %v87, 2147483648
    %v90 = vmul.f32 %v89, 1.442695
    %v91 = vpow.pop %v90
    %v92 = vadd.f32 %v91, 1.0
    %v93 = vrcp.pop %v92
    %v94 = vmul.f32 %v92, %v93
    %v95 = vsub.f32 1.0, %v94
    %v96 = vmul.f32 %v93, %v95
    %v97 = vadd.f32 %v93, %v96
    %vm98 = vweird.f32 %v92
    %vm99 = vweird.f32 %v93
    %vm100 = vmor %vm98, %vm99
    %v101 = vsel %vm100, %v93, %v97
    %v102 = vand.u32 2147483647, %v92
    %vm103 = vcmp.eq.f32.partialorder %v102, 8.507059e+37
    %v104 = vand.u32 %v92, 2147483648
    %v105 = vor.u32 1.1754944e-38, %v104
    %v106 = vsel %vm103, %v105, %v101
    %v107 = vmul.f32 1.0, %v106
    %v108 = vld [vmem:[#allocation4] sm:$0xff]
    %v109 = vld [vmem:[#allocation4 + $0x8] sm:$0xff]
    %v110 = vld [vmem:[#allocation4 + $0x10] sm:$0xff]
    %v111 = vld [vmem:[#allocation4 + $0x18] sm:$0xff]
    %v112 = vld [vmem:[%s4] sm:$0x1]
    %v114 = vperm.slane %v112, 0
    %v117 = vsel %vm65, %v107, 0
    %119 = vmatpush.msra.mxu0 0.0
    %120 = vmatpush.msra.mxu0 0.0
    %121 = vmatpush.msra.mxu0 0.0
    %122 = vmatpush.msra.mxu0 0.0
    %123 = vmatpush.msra.mxu0 0.0
    %124 = vmatpush.msra.mxu0 0.0
    %125 = vmatpush.msra.mxu0 0.0
    %126 = vmatpush.msra.mxu0 0.0
    %127 = vmatpush.msra.mxu0 0.0
    %128 = vmatpush.msra.mxu0 0.0
    %129 = vmatpush.msra.mxu0 0.0
    %130 = vmatpush.msra.mxu0 0.0
    %131 = vmatpush.msra.mxu0 %v111
    %132 = vmatpush.msra.mxu0 %v110
    %133 = vmatpush.msra.mxu0 %v109
    %134 = vmatpush.msra.mxu0 %v108
    %135 = vmatmul.f32.gmra.mxu0 %v117
    %v136 = vpop.f32.mrf.mxu0
    %v137 = vadd.f32 %v114, %v136
    %138 = vdwg.mxu0
    %v139 = vmax.f32 %v137, 0.0
    %v140 = vld [vmem:[%s5] sm:$0xff]
    %v141 = vld [vmem:[%s5 + $0x8] sm:$0xff]
    %v142 = vld [vmem:[%s5 + $0x10] sm:$0xff]
    %v143 = vld [vmem:[%s5 + $0x18] sm:$0xff]
    %v144 = vld [vmem:[%s6] sm:$0x1]
    %v146 = vperm.slane %v144, 0
    %v149 = vsel %vm65, %v139, 0
    %151 = vmatpush.msra.mxu0 0.0
    %152 = vmatpush.msra.mxu0 0.0
    %153 = vmatpush.msra.mxu0 0.0
    %154 = vmatpush.msra.mxu0 0.0
    %155 = vmatpush.msra.mxu0 0.0
    %156 = vmatpush.msra.mxu0 0.0
    %157 = vmatpush.msra.mxu0 0.0
    %158 = vmatpush.msra.mxu0 0.0
    %159 = vmatpush.msra.mxu0 0.0
    %160 = vmatpush.msra.mxu0 0.0
    %161 = vmatpush.msra.mxu0 0.0
    %162 = vmatpush.msra.mxu0 0.0
    %163 = vmatpush.msra.mxu0 %v143
    %164 = vmatpush.msra.mxu0 %v142
    %165 = vmatpush.msra.mxu0 %v141
    %166 = vmatpush.msra.mxu0 %v140
    %167 = vmatmul.f32.gmra.mxu0 %v149
    %v168 = vpop.f32.mrf.mxu0
    %v169 = vadd.f32 %v146, %v168
    %170 = vdwg.mxu0
    %vm171 = vcmask 31744
    %v172 = vsel %vm171, %v169, -inf
    %173 = vmax.xlane.f32.xlu0 %v172
    %v174 = vpop.xlane.xlu0 %173
    %v175 = vsub.f32 %v169, %v174
    %v176 = vmul.f32 %v175, 1.442695
    %v177 = vpow.pop %v176
    %v178 = vsel %vm171, %v177, 0.0
    %179 = vadd.xlane.f32.xlu0 %v178
    %v180 = vpop.xlane.xlu0 %179
    %v181 = vlog2.pop %v180
    %v182 = vmul.f32 %v181, 0.6931472
    %v183 = vsub.f32 %v175, %v182
    %184 = vst.msk [vmem:[%s7] sm:$0xff] %vm171, %v183
    // Predicated region
    $region38: #{artistnet_forward.1} parent=1 // pred_check
      _
    $region39: #{artistnet_forward.1} parent=1 // pred_check_branch
      %186 = sbr.rel (0) target = $region41
    $region40: #{artistnet_forward.1} parent=1 // pred_region
      _
    $region41: #{artistnet_forward.1} parent=1 // pred_fallthru
      _
    // Predicated region
    $region42: #{artistnet_forward.1} parent=1 // pred_check
      _
    $region43: #{artistnet_forward.1} parent=1 // pred_check_branch
      %188 = sbr.rel (0) target = $region45
    $region44: #{artistnet_forward.1} parent=1 // pred_region
      _
    $region45: #{artistnet_forward.1} parent=1 // pred_fallthru
      _
    %189 = vsyncpa [#allocation3], 1
    %190 = vsyncpa [#allocation5], 1

</llo_original>
